<compile_context>
chip_gen: v7x
topology: tpu7x:2x2x1
jax: 0.10.0
libtpu: 0.0.40
codegen_flags: <defaults>
</compile_context>

<pallas_src>
import functools

import jax
import jax.numpy as jnp
from jax.experimental import pallas as pl
from jax.experimental.pallas import tpu as pltpu

_SUBLANE = 8                       # minimum legal row granularity of a block
_MAX_TILE_B = 256                  # per-step batch tile cap (v7x/VMEM friendly)
_VMEM_BUDGET = 16 * 1024 * 1024    # conservative per-step footprint target


def _round_up(n, m):
    return ((n + m - 1) // m) * m


def _ode_mlp_kernel(x_ref, w1_ref, b1_ref, w2_ref, b2_ref, o_ref, *,
                    compute_dtype):
    # Layer 1: Linear(in -> hidden).  Operands cast to the MXU compute dtype
    # in-kernel (no wrapper-side cast HLOs); accumulation stays f32.
    x = x_ref[...].astype(compute_dtype)
    w1 = w1_ref[...].astype(compute_dtype)
    h = jnp.dot(x, w1, preferred_element_type=jnp.float32)
    # Layer 2: bias + Tanh in f32 (v5e-safe elementwise / EUP path).
    h = jnp.tanh(h + b1_ref[...].astype(jnp.float32))
    # Layer 3: Linear(hidden -> out); activations back to compute dtype so the
    # second dot also runs at native MXU rate.
    w2 = w2_ref[...].astype(compute_dtype)
    out = jnp.dot(h.astype(compute_dtype), w2,
                  preferred_element_type=jnp.float32)
    o_ref[...] = (out + b2_ref[...].astype(jnp.float32)).astype(o_ref.dtype)


def _row_pack(compute_dtype):
    # Rows per fully-packed sublane group for the compute dtype.
    itemsize = jnp.dtype(compute_dtype).itemsize
    if itemsize == 1:
        return 32
    if itemsize == 2:
        return 16
    return 8


def _vmem_bytes(tile_b, in_dim, hidden, out_dim, x_bytes, w_bytes, out_bytes):
    # Rough per-step footprint: double-buffered activation tiles, double-
    # buffered (constant-index) parameters, f32 `h` intermediate + headroom.
    act = 2 * tile_b * in_dim * x_bytes + 2 * tile_b * out_dim * out_bytes
    params = 2 * w_bytes * (in_dim * hidden + hidden + hidden * out_dim + out_dim)
    interm = 8 * tile_b * hidden
    return act + params + interm


def _pick_tile_b(batch, in_dim, hidden, out_dim, x_bytes, w_bytes, out_bytes,
                 row_pack):
    if batch <= row_pack:
        tile_b = _round_up(batch, _SUBLANE)
    else:
        # >= 2 programs so a 2-TensorCore chip (v7x) can shard the grid, and
        # enough programs that no tile exceeds _MAX_TILE_B.
        n_tiles = max(2, pl.cdiv(batch, _MAX_TILE_B))
        tile_b = min(_MAX_TILE_B,
                     _round_up(pl.cdiv(batch, n_tiles), row_pack))
    # Shrink if the per-step footprint would blow the (conservative) budget.
    while (tile_b > _SUBLANE and
           _vmem_bytes(tile_b, in_dim, hidden, out_dim,
                       x_bytes, w_bytes, out_bytes) > _VMEM_BUDGET):
        tile_b = max(_SUBLANE, _round_up(tile_b // 2, _SUBLANE))
    return tile_b


@functools.partial(jax.jit, static_argnames=("dt", "compute_dtype"))
def ode_solver_forward(x, w1, b1, w2, b2, dt=0.1, compute_dtype=jnp.bfloat16):
    """ODESolver.forward: sequentially applies [Linear, Tanh, Linear]."""
    del dt  # stored but unused in forward(), mirrors the PyTorch module

    batch, in_dim = x.shape
    hidden = w1.shape[1]
    out_dim = w2.shape[1]
    out_dtype = x.dtype

    # Accept 1-D (nn.Linear-style) or (1, n) biases.
    b1 = jnp.reshape(b1, (1, hidden))
    b2 = jnp.reshape(b2, (1, out_dim))

    x_bytes = x.dtype.itemsize
    w_bytes = w1.dtype.itemsize
    out_bytes = jnp.dtype(out_dtype).itemsize

    tile_b = _pick_tile_b(batch, in_dim, hidden, out_dim,
                          x_bytes, w_bytes, out_bytes,
                          _row_pack(compute_dtype))
    grid = (pl.cdiv(batch, tile_b),)

    rows = grid[0] * tile_b
    cost = pl.CostEstimate(
        flops=2 * rows * (in_dim * hidden + hidden * out_dim),
        transcendentals=rows * hidden,
        bytes_accessed=(x.size * x_bytes
                        + w1.size * w_bytes + b1.size * b1.dtype.itemsize
                        + w2.size * w_bytes + b2.size * b2.dtype.itemsize
                        + batch * out_dim * out_bytes),
    )

    kernel = functools.partial(_ode_mlp_kernel, compute_dtype=compute_dtype)

    return pl.pallas_call(
        kernel,
        out_shape=jax.ShapeDtypeStruct((batch, out_dim), out_dtype),
        grid=grid,
        in_specs=[
            # activations: tiled along batch (last block may be partial)
            pl.BlockSpec((tile_b, in_dim), lambda i: (i, 0)),
            # parameters: same block every grid step -> VMEM-resident
            pl.BlockSpec((in_dim, hidden), lambda i: (0, 0)),
            pl.BlockSpec((1, hidden), lambda i: (0, 0)),
            pl.BlockSpec((hidden, out_dim), lambda i: (0, 0)),
            pl.BlockSpec((1, out_dim), lambda i: (0, 0)),
        ],
        out_specs=pl.BlockSpec((tile_b, out_dim), lambda i: (i, 0)),
        compiler_params=pltpu.CompilerParams(
            dimension_semantics=("parallel",),
            vmem_limit_bytes=32 * 1024 * 1024,
        ),
        cost_estimate=cost,
    )(x, w1, b1, w2, b2)


def _reference_forward_matched(x, w1, b1, w2, b2, compute_dtype=jnp.bfloat16):
    # Pure-JAX reference using the SAME bf16-matmul / f32-accumulate recipe.
    xc = x.astype(compute_dtype)
    w1c = w1.astype(compute_dtype)
    w2c = w2.astype(compute_dtype)
    h = jnp.tanh(jnp.dot(xc, w1c, preferred_element_type=jnp.float32)
                 + jnp.reshape(b1, (1, -1)).astype(jnp.float32))
    out = (jnp.dot(h.astype(compute_dtype), w2c,
                   preferred_element_type=jnp.float32)
           + jnp.reshape(b2, (1, -1)).astype(jnp.float32))
    return out.astype(x.dtype)


def _reference_forward_f32(x, w1, b1, w2, b2):
    # Full-precision reference of the sequential layer application.
    h = jnp.tanh(x @ w1 + jnp.reshape(b1, (1, -1)))
    return h @ w2 + jnp.reshape(b2, (1, -1))


if __name__ == "__main__":
    key = jax.random.PRNGKey(0)
    k_x, k_w1, k_b1, k_w2, k_b2, k_x2 = jax.random.split(key, 6)

    batch, in_dim, hidden, out_dim = 8, 16, 32, 16
    dt = 0.1

    x = jax.random.normal(k_x, (batch, in_dim), dtype=jnp.float32)
    # Deterministic synthetic parameters (stored as (in_features, out_features)
    # so the kernel computes x @ W + b); biases 1-D like nn.Linear.
    w1 = jax.random.normal(k_w1, (in_dim, hidden), dtype=jnp.float32) * 0.1
    b1 = jax.random.normal(k_b1, (hidden,), dtype=jnp.float32) * 0.1
    w2 = jax.random.normal(k_w2, (hidden, out_dim), dtype=jnp.float32) * 0.1
    b2 = jax.random.normal(k_b2, (out_dim,), dtype=jnp.float32) * 0.1

    out = jax.block_until_ready(ode_solver_forward(x, w1, b1, w2, b2, dt=dt))
    assert out.shape == (batch, out_dim)

    ref_matched = _reference_forward_matched(x, w1, b1, w2, b2)
    ref_f32 = _reference_forward_f32(x, w1, b1, w2, b2)
    assert jnp.allclose(out, ref_matched, atol=1e-3, rtol=1e-3), \
        "mismatch vs bf16-matched reference"
    assert jnp.allclose(out, ref_f32, atol=3e-2, rtol=3e-2), \
        "mismatch vs f32 reference"

    # Second check: multi-tile grid (>= 2 programs) with a partial final block.
    batch2 = 600
    x2 = jax.random.normal(k_x2, (batch2, in_dim), dtype=jnp.float32)
    out2 = jax.block_until_ready(ode_solver_forward(x2, w1, b1, w2, b2, dt=dt))
    assert out2.shape == (batch2, out_dim)
    ref2 = _reference_forward_matched(x2, w1, b1, w2, b2)
    assert jnp.allclose(out2, ref2, atol=1e-3, rtol=1e-3), \
        "mismatch vs reference (tiled batch)"

    print("KERNEL_OK")
</pallas_src>

<mosaic_0001>
module attributes {stable_mosaic.version = 11 : i64} {
  func.func @_ode_mlp_kernel(%arg0: i32, %arg1: memref<8x16xf32, #tpu.memory_space<vmem>>, %arg2: memref<16x32xf32, #tpu.memory_space<vmem>>, %arg3: memref<1x32xf32, #tpu.memory_space<vmem>>, %arg4: memref<32x16xf32, #tpu.memory_space<vmem>>, %arg5: memref<1x16xf32, #tpu.memory_space<vmem>>, %arg6: memref<8x16xf32, #tpu.memory_space<vmem>>) attributes {dimension_semantics = [#tpu.dimension_semantics<parallel>], iteration_bounds = array<i64: 1>, scalar_prefetch = 0 : i64, scratch_operands = 0 : i64, tpu.core_type = #tpu.core_type<tc>, window_params = [{transform_indices = @transform_0, window_bounds = array<i64: 8, 16>}, {pipeline_mode = #tpu.pipeline_mode<synchronous>, transform_indices = @transform_1, window_bounds = array<i64: 16, 32>}, {pipeline_mode = #tpu.pipeline_mode<synchronous>, transform_indices = @transform_2, window_bounds = array<i64: 1, 32>}, {pipeline_mode = #tpu.pipeline_mode<synchronous>, transform_indices = @transform_3, window_bounds = array<i64: 32, 16>}, {pipeline_mode = #tpu.pipeline_mode<synchronous>, transform_indices = @transform_4, window_bounds = array<i64: 1, 16>}, {transform_indices = @transform_5, window_bounds = array<i64: 8, 16>}]} {
    %c0 = arith.constant 0 : index
    %c0_0 = arith.constant 0 : index
    %0 = vector.load %arg1[%c0, %c0_0] : memref<8x16xf32, #tpu.memory_space<vmem>>, vector<8x16xf32>
    %1 = arith.truncf %0 : vector<8x16xf32> to vector<8x16xbf16>
    %c0_1 = arith.constant 0 : index
    %c0_2 = arith.constant 0 : index
    %2 = vector.load %arg2[%c0_1, %c0_2] : memref<16x32xf32, #tpu.memory_space<vmem>>, vector<16x32xf32>
    %3 = arith.truncf %2 : vector<16x32xf32> to vector<16x32xbf16>
    %cst = arith.constant dense<0.000000e+00> : vector<8x32xf32>
    %4 = tpu.matmul %1, %3, %cst {dimension_numbers = #tpu.dot_dimension_numbers<[1], [0], [0], [1], [0, 0, 1, 1], [], []>} : vector<8x16xbf16>, vector<16x32xbf16>, vector<8x32xf32> -> vector<8x32xf32>
    %c0_3 = arith.constant 0 : index
    %c0_4 = arith.constant 0 : index
    %5 = vector.load %arg3[%c0_3, %c0_4] : memref<1x32xf32, #tpu.memory_space<vmem>>, vector<1x32xf32>
    %6 = vector.broadcast %5 : vector<1x32xf32> to vector<8x32xf32>
    %7 = arith.addf %4, %6 : vector<8x32xf32>
    %8 = math.tanh %7 : vector<8x32xf32>
    %c0_5 = arith.constant 0 : index
    %c0_6 = arith.constant 0 : index
    %9 = vector.load %arg4[%c0_5, %c0_6] : memref<32x16xf32, #tpu.memory_space<vmem>>, vector<32x16xf32>
    %10 = arith.truncf %9 : vector<32x16xf32> to vector<32x16xbf16>
    %11 = arith.truncf %8 : vector<8x32xf32> to vector<8x32xbf16>
    %cst_7 = arith.constant dense<0.000000e+00> : vector<8x16xf32>
    %12 = tpu.matmul %11, %10, %cst_7 {dimension_numbers = #tpu.dot_dimension_numbers<[1], [0], [0], [1], [0, 0, 1, 1], [], []>} : vector<8x32xbf16>, vector<32x16xbf16>, vector<8x16xf32> -> vector<8x16xf32>
    %c0_8 = arith.constant 0 : index
    %c0_9 = arith.constant 0 : index
    %13 = vector.load %arg5[%c0_8, %c0_9] : memref<1x16xf32, #tpu.memory_space<vmem>>, vector<1x16xf32>
    %14 = vector.broadcast %13 : vector<1x16xf32> to vector<8x16xf32>
    %15 = arith.addf %12, %14 : vector<8x16xf32>
    %c0_10 = arith.constant 0 : index
    %c0_11 = arith.constant 0 : index
    %16 = vector.load %arg6[%c0_10, %c0_11] : memref<8x16xf32, #tpu.memory_space<vmem>>, vector<8x16xf32>
    tpu.vector_store %arg6[%c0_10, %c0_11], %15 {strides = array<i32>} : memref<8x16xf32, #tpu.memory_space<vmem>>, vector<8x16xf32>,
    return
  }
  func.func @transform_0(%arg0: i32) -> (i32, i32) {
    %c0_i32 = arith.constant 0 : i32
    %c0_i32_0 = arith.constant 0 : i32
    return %arg0, %c0_i32 : i32, i32
  }
  func.func @transform_1(%arg0: i32) -> (i32, i32) {
    %c0_i32 = arith.constant 0 : i32
    %c0_i32_0 = arith.constant 0 : i32
    %c0_i32_1 = arith.constant 0 : i32
    return %c0_i32, %c0_i32_0 : i32, i32
  }
  func.func @transform_2(%arg0: i32) -> (i32, i32) {
    %c0_i32 = arith.constant 0 : i32
    %c0_i32_0 = arith.constant 0 : i32
    %c0_i32_1 = arith.constant 0 : i32
    return %c0_i32, %c0_i32_0 : i32, i32
  }
  func.func @transform_3(%arg0: i32) -> (i32, i32) {
    %c0_i32 = arith.constant 0 : i32
    %c0_i32_0 = arith.constant 0 : i32
    %c0_i32_1 = arith.constant 0 : i32
    return %c0_i32, %c0_i32_0 : i32, i32
  }
  func.func @transform_4(%arg0: i32) -> (i32, i32) {
    %c0_i32 = arith.constant 0 : i32
    %c0_i32_0 = arith.constant 0 : i32
    %c0_i32_1 = arith.constant 0 : i32
    return %c0_i32, %c0_i32_0 : i32, i32
  }
  func.func @transform_5(%arg0: i32) -> (i32, i32) {
    %c0_i32 = arith.constant 0 : i32
    %c0_i32_0 = arith.constant 0 : i32
    return %arg0, %c0_i32 : i32, i32
  }
}

</mosaic_0001>

<llo_original>
// kernel: ode_solver_forward.1
$region0: #{ode_solver_forward.1}
  #allocation0 [shape = 'u32[]', space=smem, size = 0x4, offset = 0x4, fixed_abs, tag = 'smem constant byte address 0x4 - core index']
  #allocation1 [shape = 'u32[144,128]{1,0:T(1,128)}', space=vmem, size = 0x12000, scoped, tag = 'internal scratch']
  %s0 = inlined_call_operand.vmem [shape: f32[8,16], index: 0, kind: input, shape index: {}]
  %s1 = inlined_call_operand.vmem [shape: f32[16,32], index: 1, kind: input, shape index: {}]
  %s2 = inlined_call_operand.vmem [shape: f32[1,32], index: 2, kind: input, shape index: {}]
  %s3 = inlined_call_operand.vmem [shape: f32[32,16], index: 3, kind: input, shape index: {}]
  %s4 = inlined_call_operand.vmem [shape: f32[1,16], index: 4, kind: input, shape index: {}]
  %s5 = inlined_call_operand.hbm [shape: f32[8,16], index: 5, kind: output, shape index: {}]
  %s6 = sld [smem:[#allocation0]]
  $region30: #{ode_solver_forward.1} parent=0
    _
  %s8 = ssub.s32 1, %s6
  %s9 = scalar_select 0, %s8, %s6
  $region1: #{ode_solver_forward.1} parent=0
    #allocation2 [shape = 'u8[4096]{0}', space=vmem, size = 0x1000, scoped, tag = 'output window, operand 0, single buffered']
    #allocation3 [shape = 's32[1]{0}', space=sflag, size = 0x4, scoped, tag = 'scoped memory for ode_solver_forward.1']
    %10 = vsyncpa [#allocation3], 0
    // Predicated region
    $region2: #{ode_solver_forward.1} parent=1 // pred_check
      _
    $region3: #{ode_solver_forward.1} parent=1 // pred_check_branch
      %12 = sbr.rel (0) target = $region5
    $region4: #{ode_solver_forward.1} parent=1 // pred_region
      _
    $region5: #{ode_solver_forward.1} parent=1 // pred_fallthru
      _
    // Predicated region
    $region6: #{ode_solver_forward.1} parent=1 // pred_check
      _
    $region7: #{ode_solver_forward.1} parent=1 // pred_check_branch
      %14 = sbr.rel (0) target = $region9
    $region8: #{ode_solver_forward.1} parent=1 // pred_region
      _
    $region9: #{ode_solver_forward.1} parent=1 // pred_fallthru
      _
    // Predicated region
    $region10: #{ode_solver_forward.1} parent=1 // pred_check
      _
    $region11: #{ode_solver_forward.1} parent=1 // pred_check_branch
      %16 = sbr.rel (0) target = $region13
    $region12: #{ode_solver_forward.1} parent=1 // pred_region
      _
    $region13: #{ode_solver_forward.1} parent=1 // pred_fallthru
      _
    // Predicated region
    $region14: #{ode_solver_forward.1} parent=1 // pred_check
      _
    $region15: #{ode_solver_forward.1} parent=1 // pred_check_branch
      %18 = sbr.rel (0) target = $region17
    $region16: #{ode_solver_forward.1} parent=1 // pred_region
      _
    $region17: #{ode_solver_forward.1} parent=1 // pred_fallthru
      _
    // Predicated region
    $region18: #{ode_solver_forward.1} parent=1 // pred_check
      _
    $region19: #{ode_solver_forward.1} parent=1 // pred_check_branch
      %20 = sbr.rel (0) target = $region21
    $region20: #{ode_solver_forward.1} parent=1 // pred_region
      _
    $region21: #{ode_solver_forward.1} parent=1 // pred_fallthru
      _
    %v22 = vld [vmem:[%s0] sm:$0xff]
    %v23 = vpack.c.bf16 %v22, %v22
    %v24 = vld [vmem:[%s1] sm:$0xff]
    %v25 = vld [vmem:[%s1 + $0x8] sm:$0xff]
    %v26 = vpack.c.bf16 %v25, %v24
    %v27 = vld [vmem:[%s2] sm:$0x1]
    %v29 = vlaneseq
    %v30 = vshrl.u32 %v29, 7
    %v31 = vsub.s32 0, %v30
    %v32 = vrot.slane %v27, %v31
    %vm34 = vcmask 130048
    %v36 = vsel %vm34, %v23, 0
    %38 = vmatprep.subr.bf16.mxu0 0
    %39 = vmatpush1.bf16.msra.mxu0 %v26
    %40 = vmatprep.subr.bf16.mxu0 0
    %41 = vmatpush1.bf16.msra.mxu0 0
    %42 = vmatprep.subr.bf16.mxu0 0
    %43 = vmatpush1.bf16.msra.mxu0 0
    %44 = vmatprep.subr.bf16.mxu0 0
    %45 = vmatpush1.bf16.msra.mxu0 0
    %46 = vmatprep.subr.bf16.mxu0 0
    %47 = vmatpush1.bf16.msra.mxu0 0
    %48 = vmatprep.subr.bf16.mxu0 0
    %49 = vmatpush1.bf16.msra.mxu0 0
    %50 = vmatprep.subr.bf16.mxu0 0
    %51 = vmatpush1.bf16.msra.mxu0 0
    %52 = vmatprep.subr.bf16.mxu0 0
    %53 = vmatpush1.bf16.msra.mxu0 0
    %54 = vmatprep.subr.bf16.mxu0 0
    %55 = vmatpush1.bf16.msra.mxu0 0
    %56 = vmatprep.subr.bf16.mxu0 0
    %57 = vmatpush1.bf16.msra.mxu0 0
    %58 = vmatprep.subr.bf16.mxu0 0
    %59 = vmatpush1.bf16.msra.mxu0 0
    %60 = vmatprep.subr.bf16.mxu0 0
    %61 = vmatpush1.bf16.msra.mxu0 0
    %62 = vmatprep.subr.bf16.mxu0 0
    %63 = vmatpush1.bf16.msra.mxu0 0
    %64 = vmatprep.subr.bf16.mxu0 0
    %65 = vmatpush1.bf16.msra.mxu0 0
    %66 = vmatprep.subr.bf16.mxu0 0
    %67 = vmatpush1.bf16.msra.mxu0 0
    %68 = vmatprep.subr.bf16.mxu0 0
    %69 = vmatpush1.bf16.msra.mxu0 0
    %70 = vmatprep.mubr.bf16.mxu0 0
    %71 = vmatmul.mubr.bf16.gmra.mrb[0].mxu0 %v36
    %v72 = vpop.f32.mrb[0].mxu0
    %v73 = vadd.f32 %v32, %v72
    %v74 = vpop.f32.mrb[0].mxu0
    %v75 = vpop.f32.mrb[0].mxu0
    %v76 = vpop.f32.mrb[0].mxu0
    %77 = vdwg.mxu0
    %v78 = vtanh.pop %v73
    %v79 = vld [vmem:[%s3] sm:$0xff]
    %v80 = vld [vmem:[%s3 + $0x8] sm:$0xff]
    %v81 = vld [vmem:[%s3 + $0x10] sm:$0xff]
    %v82 = vld [vmem:[%s3 + $0x18] sm:$0xff]
    %v83 = vpack.c.bf16 %v80, %v79
    %v84 = vpack.c.bf16 %v82, %v81
    %v85 = vpack.c.bf16 %v78, %v78
    %v86 = vld [vmem:[%s4] sm:$0x1]
    %v88 = vlaneseq
    %v89 = vshrl.u32 %v88, 7
    %v90 = vsub.s32 0, %v89
    %v91 = vrot.slane %v86, %v90
    %vm93 = vcmask 261120
    %v95 = vsel %vm93, %v85, 0
    %97 = vmatprep.subr.bf16.mxu0 0
    %98 = vmatpush1.bf16.msra.mxu0 %v83
    %99 = vmatprep.subr.bf16.mxu0 0
    %100 = vmatpush1.bf16.msra.mxu0 %v84
    %101 = vmatprep.subr.bf16.mxu0 0
    %102 = vmatpush1.bf16.msra.mxu0 0
    %103 = vmatprep.subr.bf16.mxu0 0
    %104 = vmatpush1.bf16.msra.mxu0 0
    %105 = vmatprep.subr.bf16.mxu0 0
    %106 = vmatpush1.bf16.msra.mxu0 0
    %107 = vmatprep.subr.bf16.mxu0 0
    %108 = vmatpush1.bf16.msra.mxu0 0
    %109 = vmatprep.subr.bf16.mxu0 0
    %110 = vmatpush1.bf16.msra.mxu0 0
    %111 = vmatprep.subr.bf16.mxu0 0
    %112 = vmatpush1.bf16.msra.mxu0 0
    %113 = vmatprep.subr.bf16.mxu0 0
    %114 = vmatpush1.bf16.msra.mxu0 0
    %115 = vmatprep.subr.bf16.mxu0 0
    %116 = vmatpush1.bf16.msra.mxu0 0
    %117 = vmatprep.subr.bf16.mxu0 0
    %118 = vmatpush1.bf16.msra.mxu0 0
    %119 = vmatprep.subr.bf16.mxu0 0
    %120 = vmatpush1.bf16.msra.mxu0 0
    %121 = vmatprep.subr.bf16.mxu0 0
    %122 = vmatpush1.bf16.msra.mxu0 0
    %123 = vmatprep.subr.bf16.mxu0 0
    %124 = vmatpush1.bf16.msra.mxu0 0
    %125 = vmatprep.subr.bf16.mxu0 0
    %126 = vmatpush1.bf16.msra.mxu0 0
    %127 = vmatprep.subr.bf16.mxu0 0
    %128 = vmatpush1.bf16.msra.mxu0 0
    %129 = vmatprep.mubr.bf16.mxu0 0
    %130 = vmatmul.mubr.bf16.gmra.mrb[0].mxu0 %v95
    %v131 = vpop.f32.mrb[0].mxu0
    %v132 = vadd.f32 %v91, %v131
    %v133 = vpop.f32.mrb[0].mxu0
    %v134 = vpop.f32.mrb[0].mxu0
    %v135 = vpop.f32.mrb[0].mxu0
    %136 = vdwg.mxu0
    %137 = vst.msk [vmem:[#allocation2] sm:$0xff] %vm34, %v132
    // Predicated region
    $region22: #{ode_solver_forward.1} parent=1 // pred_check
      _
    $region23: #{ode_solver_forward.1} parent=1 // pred_check_branch
      %139 = sbr.rel (0) target = $region25
    $region24: #{ode_solver_forward.1} parent=1 // pred_region
      %s141 = ssub.s32 128, 128
      %142 = vsyncadd [#allocation3], %s141
      %s144 = sshll.u32 [#allocation2], 4
      %s145 = int_to_ptr.vmem [resolvable:$true] %s144
      %147 = dma.vmem_to_hbm [thread:$0]  %s145, 128, %s5, [#allocation3]
    $region25: #{ode_solver_forward.1} parent=1 // pred_fallthru
      _
    // Predicated region
    $region26: #{ode_solver_forward.1} parent=1 // pred_check
      _
    $region27: #{ode_solver_forward.1} parent=1 // pred_check_branch
      %149 = sbr.rel (0) target = $region29
    $region28: #{ode_solver_forward.1} parent=1 // pred_region
      %150 = dma.done [#allocation3], 128
    $region29: #{ode_solver_forward.1} parent=1 // pred_fallthru
      _
    %151 = vsyncpa [#allocation3], 1

</llo_original>
